<compile_context>
chip_gen: v6e
topology: v6e:2x2x1
jax: 0.10.0
libtpu: 0.0.40
codegen_flags: <defaults>
</compile_context>

<pallas_src>
import functools

import jax
import jax.numpy as jnp
from jax.experimental import pallas as pl
from jax.experimental.pallas import tpu as pltpu


def _round_up(x, m):
    return ((x + m - 1) // m) * m


def _pad_to(a, shape):
    pads = [(0, t - s) for s, t in zip(a.shape, shape)]
    return jnp.pad(a, pads)


def _pick_sample_block(num_samples, batch):
    """Pick how many samples to fold into one grid step (~512 rows target)."""
    target = max(1, 512 // max(batch, 1))
    for sb in range(min(num_samples, target), 0, -1):
        if num_samples % sb == 0 and ((sb * batch) % 8 == 0 or sb == num_samples):
            return sb
    return num_samples


def adaptive_mlp_kernel(thr_ref,            # SMEM scalar prefetch: (1,) int32 threshold
                        x_ref,              # (N, Dp)            bf16
                        w0_ref, b0_ref,     # (Dp, Hp) bf16, (1, Hp) f32   -- first MLPBlock
                        wr_ref, br_ref,     # (L, Hp, Hp) bf16, (L, 1, Hp) f32 -- residual blocks
                        wo_ref, bo_ref,     # (Hp, Op) bf16, (1, Op) f32   -- out_layer
                        mask_ref,           # (num_layers, S_blk*N, Hp) bf16 -- row-expanded Z
                        out_ref,            # (S_blk*N, Op) f32             -- lane-dense output
                        h_scratch,          # VMEM (S_blk*N, Hp) f32
                        *, samples_per_block, num_res):
    thr = thr_ref[0]

    # ---- Layer 0: sample-invariant compute done ONCE per grid step at (N, Hp). ----
    # (threshold >= 1 is assumed, as in the reference module: out_layer needs an H-dim input.)
    h0 = jnp.maximum(
        jnp.dot(x_ref[...], w0_ref[...], preferred_element_type=jnp.float32)
        + b0_ref[...], 0.0)

    # Tile across the samples of this block and apply per-sample layer-0 masks.
    h_scratch[...] = (jnp.concatenate([h0] * samples_per_block, axis=0)
                      * mask_ref[0].astype(jnp.float32))

    # ---- Residual MLPBlocks: only the first (threshold - 1) of them run. ----
    n_active = jnp.clip(thr - 1, 0, num_res)

    @pl.loop(0, n_active)
    def _(l):
        h = h_scratch[...]                            # (rows, Hp) f32
        w = wr_ref[l]                                 # (Hp, Hp)   bf16 (dynamic leading index)
        b = br_ref[l]                                 # (1, Hp)    f32
        m = mask_ref[l + 1].astype(jnp.float32)       # (rows, Hp)
        out = jnp.maximum(
            jnp.dot(h.astype(jnp.bfloat16), w, preferred_element_type=jnp.float32) + b,
            0.0) * m
        h_scratch[...] = out + h                      # residual connection

    # ---- out_layer: plain Linear(Hp -> Op), lane-dense store. ----
    out_ref[...] = (jnp.dot(h_scratch[...].astype(jnp.bfloat16), wo_ref[...],
                            preferred_element_type=jnp.float32)
                    + bo_ref[...]).astype(out_ref.dtype)


def adaptive_mlp_forward(threshold, x, w0, b0, wr, br, wo, bo, Z):
    S, num_layers, H = Z.shape
    N, D = x.shape
    L = wr.shape[0]
    O = wo.shape[1]
    assert num_layers == L + 1

    # Pad feature dims to the 128-lane width (zero padding is mathematically inert).
    Dp = _round_up(D, 128)
    Hp = _round_up(H, 128)
    Op = _round_up(O, 128)

    # bf16 MXU inputs; biases stay f32 (f32 accumulation inside the kernel).
    x_p = _pad_to(x, (N, Dp)).astype(jnp.bfloat16)
    w0_p = _pad_to(w0, (Dp, Hp)).astype(jnp.bfloat16)
    b0_p = _pad_to(b0.reshape(1, H), (1, Hp)).astype(jnp.float32)
    wr_p = _pad_to(wr, (L, Hp, Hp)).astype(jnp.bfloat16)
    br_p = _pad_to(br.reshape(L, 1, H), (L, 1, Hp)).astype(jnp.float32)
    wo_p = _pad_to(wo, (Hp, Op)).astype(jnp.bfloat16)
    bo_p = _pad_to(bo.reshape(1, O), (1, Op)).astype(jnp.float32)

    # Expand masks to the folded row layout: row s*N + n carries sample s's mask.
    # (num_layers, S*N, Hp) in bf16 (0/1 exact); layout plumbing done once in the wrapper.
    mask_full = jnp.broadcast_to(Z.astype(jnp.float32)[:, :, None, :],
                                 (S, num_layers, N, H))
    mask_full = _pad_to(mask_full.transpose(1, 0, 2, 3).reshape(num_layers, S * N, H),
                        (num_layers, S * N, Hp)).astype(jnp.bfloat16)

    s_blk = _pick_sample_block(S, N)
    rows_per_block = s_blk * N
    grid = (S // s_blk,)

    kernel = functools.partial(adaptive_mlp_kernel,
                               samples_per_block=s_blk, num_res=L)

    grid_spec = pltpu.PrefetchScalarGridSpec(
        num_scalar_prefetch=1,
        grid=grid,
        in_specs=[
            pl.BlockSpec((N, Dp), lambda i, thr: (0, 0)),                              # x
            pl.BlockSpec((Dp, Hp), lambda i, thr: (0, 0)),                             # w0
            pl.BlockSpec((1, Hp), lambda i, thr: (0, 0)),                              # b0
            pl.BlockSpec((L, Hp, Hp), lambda i, thr: (0, 0, 0)),                       # wr
            pl.BlockSpec((L, 1, Hp), lambda i, thr: (0, 0, 0)),                        # br
            pl.BlockSpec((Hp, Op), lambda i, thr: (0, 0)),                             # wo
            pl.BlockSpec((1, Op), lambda i, thr: (0, 0)),                              # bo
            pl.BlockSpec((num_layers, rows_per_block, Hp), lambda i, thr: (0, i, 0)),  # masks
        ],
        out_specs=pl.BlockSpec((rows_per_block, Op), lambda i, thr: (i, 0)),
        scratch_shapes=[pltpu.VMEM((rows_per_block, Hp), jnp.float32)],
    )

    out = pl.pallas_call(
        kernel,
        out_shape=jax.ShapeDtypeStruct((S * N, Op), jnp.float32),
        grid_spec=grid_spec,
        compiler_params=pltpu.CompilerParams(dimension_semantics=("parallel",)),
    )(threshold, x_p, w0_p, b0_p, wr_p, br_p, wo_p, bo_p, mask_full)

    # Strip lane padding and un-fold samples: (S*N, Op) -> (S, N, O).
    return out[:, :O].reshape(S, N, O)


def adaptive_mlp_reference(threshold, x, w0, b0, wr, br, wo, bo, Z):
    """Pure-JAX reference with the same bf16-input / f32-accumulate matmul convention."""
    thr = int(threshold[0])
    bf = jnp.bfloat16
    outs = []
    for s in range(Z.shape[0]):
        h = jnp.maximum(
            jnp.dot(x.astype(bf), w0.astype(bf), preferred_element_type=jnp.float32)
            + b0, 0.0) * Z[s, 0]
        for l in range(wr.shape[0]):
            if l + 1 < thr:
                o = jnp.maximum(
                    jnp.dot(h.astype(bf), wr[l].astype(bf),
                            preferred_element_type=jnp.float32) + br[l], 0.0) * Z[s, l + 1]
                h = o + h
        outs.append(jnp.dot(h.astype(bf), wo.astype(bf),
                            preferred_element_type=jnp.float32) + bo)
    return jnp.stack(outs, axis=0)


if __name__ == "__main__":
    # Small shapes consistent with the module.
    batch = 8
    input_feature_dim = 16
    max_width = 32            # args.max_width
    out_feature_dim = 4       # out_feature_dim
    truncation_level = 3      # args.truncation_level
    num_samples = 2           # args.num_samples
    num_layers = truncation_level + 1  # len(self.layers)

    key = jax.random.PRNGKey(0)
    ks = jax.random.split(key, 9)

    x = jax.random.normal(ks[0], (batch, input_feature_dim), dtype=jnp.float32)

    # Deterministic parameter init (synthetic; torch __init__ only defines shapes).
    w0 = 0.1 * jax.random.normal(ks[1], (input_feature_dim, max_width), dtype=jnp.float32)
    b0 = 0.1 * jax.random.normal(ks[2], (1, max_width), dtype=jnp.float32)
    wr = 0.1 * jax.random.normal(ks[3], (truncation_level, max_width, max_width),
                                 dtype=jnp.float32)
    br = 0.1 * jax.random.normal(ks[4], (truncation_level, max_width), dtype=jnp.float32)
    wo = 0.1 * jax.random.normal(ks[5], (max_width, out_feature_dim), dtype=jnp.float32)
    bo = 0.1 * jax.random.normal(ks[6], (1, out_feature_dim), dtype=jnp.float32)

    # Synthetic Beta-Bernoulli structure sample: binary unit masks + layer-count threshold.
    Z = jax.random.bernoulli(ks[7], p=0.7,
                             shape=(num_samples, num_layers, max_width)).astype(jnp.float32)
    threshold = jnp.array([3], dtype=jnp.int32)

    act_vec = adaptive_mlp_forward(threshold, x, w0, b0, wr, br, wo, bo, Z)
    act_vec = jax.block_until_ready(act_vec)

    ref = adaptive_mlp_reference(threshold, x, w0, b0, wr, br, wo, bo, Z)
    assert act_vec.shape == (num_samples, batch, out_feature_dim)
    assert jnp.allclose(act_vec, ref, atol=1e-4, rtol=1e-4), "mismatch vs pure-JAX reference"

    print("KERNEL_OK")
</pallas_src>

<mosaic_0001>
module attributes {stable_mosaic.version = 11 : i64} {
  func.func @adaptive_mlp_kernel(%arg0: i32, %arg1: memref<1xi32, #tpu.memory_space<smem>>, %arg2: memref<8x128xbf16, #tpu.memory_space<vmem>>, %arg3: memref<128x128xbf16, #tpu.memory_space<vmem>>, %arg4: memref<1x128xf32, #tpu.memory_space<vmem>>, %arg5: memref<3x128x128xbf16, #tpu.memory_space<vmem>>, %arg6: memref<3x1x128xf32, #tpu.memory_space<vmem>>, %arg7: memref<128x128xbf16, #tpu.memory_space<vmem>>, %arg8: memref<1x128xf32, #tpu.memory_space<vmem>>, %arg9: memref<4x16x128xbf16, #tpu.memory_space<vmem>>, %arg10: memref<16x128xf32, #tpu.memory_space<vmem>>, %arg11: memref<16x128xf32, #tpu.memory_space<vmem>>) attributes {dimension_semantics = [#tpu.dimension_semantics<parallel>], iteration_bounds = array<i64: 1>, scalar_prefetch = 1 : i64, scratch_operands = 1 : i64, tpu.core_type = #tpu.core_type<tc>, window_params = [{pipeline_mode = #tpu.pipeline_mode<synchronous>, transform_indices = @transform_0, window_bounds = array<i64: 8, 128>}, {pipeline_mode = #tpu.pipeline_mode<synchronous>, transform_indices = @transform_1, window_bounds = array<i64: 128, 128>}, {pipeline_mode = #tpu.pipeline_mode<synchronous>, transform_indices = @transform_2, window_bounds = array<i64: 1, 128>}, {pipeline_mode = #tpu.pipeline_mode<synchronous>, transform_indices = @transform_3, window_bounds = array<i64: 3, 128, 128>}, {pipeline_mode = #tpu.pipeline_mode<synchronous>, transform_indices = @transform_4, window_bounds = array<i64: 3, 1, 128>}, {pipeline_mode = #tpu.pipeline_mode<synchronous>, transform_indices = @transform_5, window_bounds = array<i64: 128, 128>}, {pipeline_mode = #tpu.pipeline_mode<synchronous>, transform_indices = @transform_6, window_bounds = array<i64: 1, 128>}, {transform_indices = @transform_7, window_bounds = array<i64: 4, 16, 128>}, {transform_indices = @transform_8, window_bounds = array<i64: 16, 128>}]} {
    %c0 = arith.constant 0 : index
    %0 = memref.load %arg1[%c0] : memref<1xi32, #tpu.memory_space<smem>>
    %c0_0 = arith.constant 0 : index
    %c0_1 = arith.constant 0 : index
    %1 = vector.load %arg2[%c0_0, %c0_1] : memref<8x128xbf16, #tpu.memory_space<vmem>>, vector<8x128xbf16>
    %c0_2 = arith.constant 0 : index
    %c0_3 = arith.constant 0 : index
    %2 = vector.load %arg3[%c0_2, %c0_3] : memref<128x128xbf16, #tpu.memory_space<vmem>>, vector<128x128xbf16>
    %cst = arith.constant dense<0.000000e+00> : vector<8x128xf32>
    %3 = tpu.matmul %1, %2, %cst {dimension_numbers = #tpu.dot_dimension_numbers<[1], [0], [0], [1], [0, 0, 1, 1], [], []>} : vector<8x128xbf16>, vector<128x128xbf16>, vector<8x128xf32> -> vector<8x128xf32>
    %c0_4 = arith.constant 0 : index
    %c0_5 = arith.constant 0 : index
    %4 = vector.load %arg4[%c0_4, %c0_5] : memref<1x128xf32, #tpu.memory_space<vmem>>, vector<1x128xf32>
    %5 = vector.broadcast %4 : vector<1x128xf32> to vector<8x128xf32>
    %6 = arith.addf %3, %5 : vector<8x128xf32>
    %cst_6 = arith.constant 0.000000e+00 : f32
    %7 = vector.broadcast %cst_6 : f32 to vector<8x128xf32>
    %8 = arith.maximumf %6, %7 : vector<8x128xf32>
    %9 = tpu.concatenate %8, %8 in 0 : vector<8x128xf32>, vector<8x128xf32> -> vector<16x128xf32>
    %c0_7 = arith.constant 0 : index
    %c0_8 = arith.constant 0 : index
    %c0_9 = arith.constant 0 : index
    %10 = vector.load %arg9[%c0_7, %c0_8, %c0_9] : memref<4x16x128xbf16, #tpu.memory_space<vmem>>, vector<1x16x128xbf16>
    %11 = vector.shape_cast %10 : vector<1x16x128xbf16> to vector<16x128xbf16>
    %12 = arith.extf %11 : vector<16x128xbf16> to vector<16x128xf32>
    %13 = arith.mulf %9, %12 : vector<16x128xf32>
    %c0_10 = arith.constant 0 : index
    %c0_11 = arith.constant 0 : index
    %14 = vector.load %arg11[%c0_10, %c0_11] : memref<16x128xf32, #tpu.memory_space<vmem>>, vector<16x128xf32>
    tpu.vector_store %arg11[%c0_10, %c0_11], %13 {strides = array<i32>} : memref<16x128xf32, #tpu.memory_space<vmem>>, vector<16x128xf32>,
    %c1_i32 = arith.constant 1 : i32
    %15 = arith.subi %0, %c1_i32 : i32
    %c0_i32 = arith.constant 0 : i32
    %c3_i32 = arith.constant 3 : i32
    %16 = arith.maxsi %c0_i32, %15 : i32
    %17 = arith.minsi %c3_i32, %16 : i32
    %c0_i32_12 = arith.constant 0 : i32
    %18 = arith.subi %17, %c0_i32_12 : i32
    %c1_i32_13 = arith.constant 1 : i32
    %c1_i32_14 = arith.constant 1 : i32
    %19 = arith.subi %c1_i32_13, %c1_i32_14 : i32
    %20 = arith.addi %18, %19 : i32
    %c1_i32_15 = arith.constant 1 : i32
    %21 = arith.divsi %20, %c1_i32_15 : i32
    %c1_i32_16 = arith.constant 1 : i32
    %c0_i32_17 = arith.constant 0 : i32
    %c0_i32_18 = arith.constant 0 : i32
    %22 = arith.subi %21, %c0_i32_18 : i32
    %23 = arith.addi %c0_i32_18, %22 : i32
    %c1_i32_19 = arith.constant 1 : i32
    scf.for %arg12 = %c0_i32_18 to %23 step %c1_i32_19  : i32 {
      %32 = arith.muli %arg12, %c1_i32_16 : i32
      %33 = arith.addi %c0_i32_17, %32 : i32
      %c0_29 = arith.constant 0 : index
      %c0_30 = arith.constant 0 : index
      %34 = vector.load %arg11[%c0_29, %c0_30] : memref<16x128xf32, #tpu.memory_space<vmem>>, vector<16x128xf32>
      %35 = arith.index_cast %33 : i32 to index
      %c0_31 = arith.constant 0 : index
      %c0_32 = arith.constant 0 : index
      %36 = vector.load %arg5[%35, %c0_31, %c0_32] : memref<3x128x128xbf16, #tpu.memory_space<vmem>>, vector<1x128x128xbf16>
      %37 = vector.shape_cast %36 : vector<1x128x128xbf16> to vector<128x128xbf16>
      %38 = arith.index_cast %33 : i32 to index
      %c0_33 = arith.constant 0 : index
      %c0_34 = arith.constant 0 : index
      %39 = vector.load %arg6[%38, %c0_33, %c0_34] : memref<3x1x128xf32, #tpu.memory_space<vmem>>, vector<1x1x128xf32>
      %40 = vector.shape_cast %39 : vector<1x1x128xf32> to vector<1x128xf32>
      %c1_i32_35 = arith.constant 1 : i32
      %41 = arith.addi %33, %c1_i32_35 : i32
      %42 = arith.index_cast %41 : i32 to index
      %c0_36 = arith.constant 0 : index
      %c0_37 = arith.constant 0 : index
      %43 = vector.load %arg9[%42, %c0_36, %c0_37] : memref<4x16x128xbf16, #tpu.memory_space<vmem>>, vector<1x16x128xbf16>
      %44 = vector.shape_cast %43 : vector<1x16x128xbf16> to vector<16x128xbf16>
      %45 = arith.extf %44 : vector<16x128xbf16> to vector<16x128xf32>
      %46 = arith.truncf %34 : vector<16x128xf32> to vector<16x128xbf16>
      %cst_38 = arith.constant dense<0.000000e+00> : vector<16x128xf32>
      %47 = tpu.matmul %46, %37, %cst_38 {dimension_numbers = #tpu.dot_dimension_numbers<[1], [0], [0], [1], [0, 0, 1, 1], [], []>} : vector<16x128xbf16>, vector<128x128xbf16>, vector<16x128xf32> -> vector<16x128xf32>
      %48 = vector.broadcast %40 : vector<1x128xf32> to vector<16x128xf32>
      %49 = arith.addf %47, %48 : vector<16x128xf32>
      %cst_39 = arith.constant 0.000000e+00 : f32
      %50 = vector.broadcast %cst_39 : f32 to vector<16x128xf32>
      %51 = arith.maximumf %49, %50 : vector<16x128xf32>
      %52 = arith.mulf %51, %45 : vector<16x128xf32>
      %53 = arith.addf %52, %34 : vector<16x128xf32>
      %c0_40 = arith.constant 0 : index
      %c0_41 = arith.constant 0 : index
      %54 = vector.load %arg11[%c0_40, %c0_41] : memref<16x128xf32, #tpu.memory_space<vmem>>, vector<16x128xf32>
      tpu.vector_store %arg11[%c0_40, %c0_41], %53 {strides = array<i32>} : memref<16x128xf32, #tpu.memory_space<vmem>>, vector<16x128xf32>,
    }
    %c0_20 = arith.constant 0 : index
    %c0_21 = arith.constant 0 : index
    %24 = vector.load %arg11[%c0_20, %c0_21] : memref<16x128xf32, #tpu.memory_space<vmem>>, vector<16x128xf32>
    %25 = arith.truncf %24 : vector<16x128xf32> to vector<16x128xbf16>
    %c0_22 = arith.constant 0 : index
    %c0_23 = arith.constant 0 : index
    %26 = vector.load %arg7[%c0_22, %c0_23] : memref<128x128xbf16, #tpu.memory_space<vmem>>, vector<128x128xbf16>
    %cst_24 = arith.constant dense<0.000000e+00> : vector<16x128xf32>
    %27 = tpu.matmul %25, %26, %cst_24 {dimension_numbers = #tpu.dot_dimension_numbers<[1], [0], [0], [1], [0, 0, 1, 1], [], []>} : vector<16x128xbf16>, vector<128x128xbf16>, vector<16x128xf32> -> vector<16x128xf32>
    %c0_25 = arith.constant 0 : index
    %c0_26 = arith.constant 0 : index
    %28 = vector.load %arg8[%c0_25, %c0_26] : memref<1x128xf32, #tpu.memory_space<vmem>>, vector<1x128xf32>
    %29 = vector.broadcast %28 : vector<1x128xf32> to vector<16x128xf32>
    %30 = arith.addf %27, %29 : vector<16x128xf32>
    %c0_27 = arith.constant 0 : index
    %c0_28 = arith.constant 0 : index
    %31 = vector.load %arg10[%c0_27, %c0_28] : memref<16x128xf32, #tpu.memory_space<vmem>>, vector<16x128xf32>
    tpu.vector_store %arg10[%c0_27, %c0_28], %30 {strides = array<i32>} : memref<16x128xf32, #tpu.memory_space<vmem>>, vector<16x128xf32>,
    return
  }
  func.func @transform_0(%arg0: i32, %arg1: memref<1xi32, #tpu.memory_space<smem>>) -> (i32, i32) {
    %c0_i32 = arith.constant 0 : i32
    %c0_i32_0 = arith.constant 0 : i32
    %c0_i32_1 = arith.constant 0 : i32
    return %c0_i32, %c0_i32_0 : i32, i32
  }
  func.func @transform_1(%arg0: i32, %arg1: memref<1xi32, #tpu.memory_space<smem>>) -> (i32, i32) {
    %c0_i32 = arith.constant 0 : i32
    %c0_i32_0 = arith.constant 0 : i32
    %c0_i32_1 = arith.constant 0 : i32
    return %c0_i32, %c0_i32_0 : i32, i32
  }
  func.func @transform_2(%arg0: i32, %arg1: memref<1xi32, #tpu.memory_space<smem>>) -> (i32, i32) {
    %c0_i32 = arith.constant 0 : i32
    %c0_i32_0 = arith.constant 0 : i32
    %c0_i32_1 = arith.constant 0 : i32
    return %c0_i32, %c0_i32_0 : i32, i32
  }
  func.func @transform_3(%arg0: i32, %arg1: memref<1xi32, #tpu.memory_space<smem>>) -> (i32, i32, i32) {
    %c0_i32 = arith.constant 0 : i32
    %c0_i32_0 = arith.constant 0 : i32
    %c0_i32_1 = arith.constant 0 : i32
    %c0_i32_2 = arith.constant 0 : i32
    return %c0_i32, %c0_i32_0, %c0_i32_1 : i32, i32, i32
  }
  func.func @transform_4(%arg0: i32, %arg1: memref<1xi32, #tpu.memory_space<smem>>) -> (i32, i32, i32) {
    %c0_i32 = arith.constant 0 : i32
    %c0_i32_0 = arith.constant 0 : i32
    %c0_i32_1 = arith.constant 0 : i32
    %c0_i32_2 = arith.constant 0 : i32
    return %c0_i32, %c0_i32_0, %c0_i32_1 : i32, i32, i32
  }
  func.func @transform_5(%arg0: i32, %arg1: memref<1xi32, #tpu.memory_space<smem>>) -> (i32, i32) {
    %c0_i32 = arith.constant 0 : i32
    %c0_i32_0 = arith.constant 0 : i32
    %c0_i32_1 = arith.constant 0 : i32
    return %c0_i32, %c0_i32_0 : i32, i32
  }
  func.func @transform_6(%arg0: i32, %arg1: memref<1xi32, #tpu.memory_space<smem>>) -> (i32, i32) {
    %c0_i32 = arith.constant 0 : i32
    %c0_i32_0 = arith.constant 0 : i32
    %c0_i32_1 = arith.constant 0 : i32
    return %c0_i32, %c0_i32_0 : i32, i32
  }
  func.func @transform_7(%arg0: i32, %arg1: memref<1xi32, #tpu.memory_space<smem>>) -> (i32, i32, i32) {
    %c0_i32 = arith.constant 0 : i32
    %c0_i32_0 = arith.constant 0 : i32
    %c0_i32_1 = arith.constant 0 : i32
    return %c0_i32, %arg0, %c0_i32_0 : i32, i32, i32
  }
  func.func @transform_8(%arg0: i32, %arg1: memref<1xi32, #tpu.memory_space<smem>>) -> (i32, i32) {
    %c0_i32 = arith.constant 0 : i32
    %c0_i32_0 = arith.constant 0 : i32
    return %arg0, %c0_i32 : i32, i32
  }
}

</mosaic_0001>

<llo_original>
// kernel: tpu_custom_call.1
$region0: #{tpu_custom_call.1}
  #allocation0 [shape = 'u32[]', space=smem, size = 0x4, offset = 0x4, fixed_abs, tag = 'smem constant byte address 0x4 - core index']
  #allocation1 [shape = 'u32[144,128]{1,0:T(1,128)}', space=vmem, size = 0x12000, scoped, tag = 'internal scratch']
  #allocation2 [shape = 'f32[16,128]{1,0:T(8,128)}', space=vmem, size = 0x2000, scoped, tag = 'scratch operand']
  #allocation3 [shape = 's32[1]{0}', space=sflag, size = 0x4, scoped, tag = 'scoped memory for tpu_custom_call.1']
  #allocation4 [shape = 's32[1]{0:T(128)S(6)}', space=smem, size = 0x200, scoped, tag = 'prefetched SMEM operand 0']
  %s0 = inlined_call_operand.<no memory space> [shape: s32[1], index: 0, kind: input, shape index: {}]
  %s1 = inlined_call_operand.hbm [shape: bf16[8,128], index: 1, kind: input, shape index: {}]
  %s2 = inlined_call_operand.hbm [shape: bf16[128,128], index: 2, kind: input, shape index: {}]
  %s3 = inlined_call_operand.vmem [shape: f32[1,128], index: 3, kind: input, shape index: {}]
  %s4 = inlined_call_operand.hbm [shape: bf16[3,128,128], index: 4, kind: input, shape index: {}]
  %s5 = inlined_call_operand.vmem [shape: f32[3,1,128], index: 5, kind: input, shape index: {}]
  %s6 = inlined_call_operand.hbm [shape: bf16[128,128], index: 6, kind: input, shape index: {}]
  %s7 = inlined_call_operand.vmem [shape: f32[1,128], index: 7, kind: input, shape index: {}]
  %s8 = inlined_call_operand.hbm [shape: bf16[4,16,128], index: 8, kind: input, shape index: {}]
  %s9 = inlined_call_operand.hbm [shape: f32[16,128], index: 9, kind: output, shape index: {}]
  %s10 = sld [smem:[#allocation0]]
  $region69: #{tpu_custom_call.1} parent=0
    _
  %s12 = ssub.s32 1, %s10
  %s13 = scalar_select 0, %s12, %s10
  %14 = sst [smem:[#allocation4]] %s0
  $region1: #{tpu_custom_call.1} parent=0
    #allocation5 [shape = 'u8[2048]{0}', space=vmem, size = 0x800, scoped, tag = 'input window, operand 1, single buffered']
    #allocation6 [shape = 's32[1]{0}', space=sflag, size = 0x4, scoped, tag = 'scoped memory for tpu_custom_call.1']
    #allocation7 [shape = 's32[1]{0}', space=sflag, size = 0x4, scoped, tag = 'scoped memory for tpu_custom_call.1']
    #allocation8 [shape = 'u8[32768]{0}', space=vmem, size = 0x8000, scoped, tag = 'input window, operand 2, single buffered']
    #allocation9 [shape = 's32[1]{0}', space=sflag, size = 0x4, scoped, tag = 'scoped memory for tpu_custom_call.1']
    #allocation10 [shape = 'u8[98304]{0}', space=vmem, size = 0x18000, scoped, tag = 'input window, operand 4, single buffered']
    #allocation11 [shape = 'u8[32768]{0}', space=vmem, size = 0x8000, scoped, tag = 'input window, operand 6, single buffered']
    #allocation12 [shape = 's32[1]{0}', space=sflag, size = 0x4, scoped, tag = 'scoped memory for tpu_custom_call.1']
    #allocation13 [shape = 'u8[16384]{0}', space=vmem, size = 0x4000, scoped, tag = 'input window, operand 8, single buffered']
    #allocation14 [shape = 'u8[8192]{0}', space=vmem, size = 0x2000, scoped, tag = 'output window, operand 0, single buffered']
    %15 = vsyncpa [#allocation6], 0
    %16 = vsyncpa [#allocation9], 0
    %17 = vsyncpa [#allocation12], 0
    %18 = vsyncpa [#allocation7], 0
    // Predicated region
    $region2: #{tpu_custom_call.1} parent=1 // pred_check
      _
    $region3: #{tpu_custom_call.1} parent=1 // pred_check_branch
      %20 = sbr.rel (0) target = $region5
    $region4: #{tpu_custom_call.1} parent=1 // pred_region
      %s22 = ssub.s32 64, 64
      %23 = vsyncadd [#allocation6], %s22
      %s25 = sshll.u32 [#allocation5], 4
      %s26 = int_to_ptr.vmem [resolvable:$true] %s25
      %28 = dma.hbm_to_vmem [thread:$0]  %s1, 64, %s26, [#allocation6]
    $region5: #{tpu_custom_call.1} parent=1 // pred_fallthru
      _
    // Predicated region
    $region6: #{tpu_custom_call.1} parent=1 // pred_check
      _
    $region7: #{tpu_custom_call.1} parent=1 // pred_check_branch
      %30 = sbr.rel (0) target = $region9
    $region8: #{tpu_custom_call.1} parent=1 // pred_region
      %s32 = ssub.s32 1024, 1024
      %33 = vsyncadd [#allocation9], %s32
      %s34 = sshll.u32 [#allocation8], 4
      %s35 = int_to_ptr.vmem [resolvable:$true] %s34
      %40 = dma.hbm_to_vmem [thread:$0]  %s2, 1024, %s35, [#allocation9], 64, 64, 4
    $region9: #{tpu_custom_call.1} parent=1 // pred_fallthru
      _
    // Predicated region
    $region10: #{tpu_custom_call.1} parent=1 // pred_check
      _
    $region11: #{tpu_custom_call.1} parent=1 // pred_check_branch
      %42 = sbr.rel (0) target = $region13
    $region12: #{tpu_custom_call.1} parent=1 // pred_region
      _
    $region13: #{tpu_custom_call.1} parent=1 // pred_fallthru
      _
    // Predicated region
    $region14: #{tpu_custom_call.1} parent=1 // pred_check
      _
    $region15: #{tpu_custom_call.1} parent=1 // pred_check_branch
      %44 = sbr.rel (0) target = $region17
    $region16: #{tpu_custom_call.1} parent=1 // pred_region
      %s46 = ssub.s32 3072, 3072
      %47 = vsyncadd [#allocation9], %s46
      %s48 = sshll.u32 [#allocation10], 4
      %s49 = int_to_ptr.vmem [resolvable:$true] %s48
      %54 = dma.hbm_to_vmem [thread:$0]  %s4, 3072, %s49, [#allocation9], 64, 64, 4
    $region17: #{tpu_custom_call.1} parent=1 // pred_fallthru
      _
    // Predicated region
    $region18: #{tpu_custom_call.1} parent=1 // pred_check
      _
    $region19: #{tpu_custom_call.1} parent=1 // pred_check_branch
      %56 = sbr.rel (0) target = $region21
    $region20: #{tpu_custom_call.1} parent=1 // pred_region
      _
    $region21: #{tpu_custom_call.1} parent=1 // pred_fallthru
      _
    // Predicated region
    $region22: #{tpu_custom_call.1} parent=1 // pred_check
      _
    $region23: #{tpu_custom_call.1} parent=1 // pred_check_branch
      %58 = sbr.rel (0) target = $region25
    $region24: #{tpu_custom_call.1} parent=1 // pred_region
      %s60 = ssub.s32 1024, 1024
      %61 = vsyncadd [#allocation12], %s60
      %s62 = sshll.u32 [#allocation11], 4
      %s63 = int_to_ptr.vmem [resolvable:$true] %s62
      %68 = dma.hbm_to_vmem [thread:$0]  %s6, 1024, %s63, [#allocation12], 64, 64, 4
    $region25: #{tpu_custom_call.1} parent=1 // pred_fallthru
      _
    // Predicated region
    $region26: #{tpu_custom_call.1} parent=1 // pred_check
      _
    $region27: #{tpu_custom_call.1} parent=1 // pred_check_branch
      %70 = sbr.rel (0) target = $region29
    $region28: #{tpu_custom_call.1} parent=1 // pred_region
      _
    $region29: #{tpu_custom_call.1} parent=1 // pred_fallthru
      _
    // Predicated region
    $region30: #{tpu_custom_call.1} parent=1 // pred_check
      _
    $region31: #{tpu_custom_call.1} parent=1 // pred_check_branch
      %72 = sbr.rel (0) target = $region33
    $region32: #{tpu_custom_call.1} parent=1 // pred_region
      %s74 = ssub.s32 512, 512
      %75 = vsyncadd [#allocation12], %s74
      %s76 = sshll.u32 [#allocation13], 4
      %s77 = int_to_ptr.vmem [resolvable:$true] %s76
      %82 = dma.hbm_to_vmem [thread:$0]  %s8, 512, %s77, [#allocation12], 64, 64, 4
    $region33: #{tpu_custom_call.1} parent=1 // pred_fallthru
      _
    // Predicated region
    $region34: #{tpu_custom_call.1} parent=1 // pred_check
      _
    $region35: #{tpu_custom_call.1} parent=1 // pred_check_branch
      %84 = sbr.rel (0) target = $region37
    $region36: #{tpu_custom_call.1} parent=1 // pred_region
      %85 = dma.done [#allocation6], 64
    $region37: #{tpu_custom_call.1} parent=1 // pred_fallthru
      _
    // Predicated region
    $region38: #{tpu_custom_call.1} parent=1 // pred_check
      _
    $region39: #{tpu_custom_call.1} parent=1 // pred_check_branch
      %87 = sbr.rel (0) target = $region41
    $region40: #{tpu_custom_call.1} parent=1 // pred_region
      %88 = dma.done [#allocation9], 1024
    $region41: #{tpu_custom_call.1} parent=1 // pred_fallthru
      _
    // Predicated region
    $region42: #{tpu_custom_call.1} parent=1 // pred_check
      _
    $region43: #{tpu_custom_call.1} parent=1 // pred_check_branch
      %90 = sbr.rel (0) target = $region45
    $region44: #{tpu_custom_call.1} parent=1 // pred_region
      %91 = dma.done [#allocation9], 3072
    $region45: #{tpu_custom_call.1} parent=1 // pred_fallthru
      _
    // Predicated region
    $region46: #{tpu_custom_call.1} parent=1 // pred_check
      _
    $region47: #{tpu_custom_call.1} parent=1 // pred_check_branch
      %93 = sbr.rel (0) target = $region49
    $region48: #{tpu_custom_call.1} parent=1 // pred_region
      %94 = dma.done [#allocation12], 1024
    $region49: #{tpu_custom_call.1} parent=1 // pred_fallthru
      _
    // Predicated region
    $region50: #{tpu_custom_call.1} parent=1 // pred_check
      _
    $region51: #{tpu_custom_call.1} parent=1 // pred_check_branch
      %96 = sbr.rel (0) target = $region53
    $region52: #{tpu_custom_call.1} parent=1 // pred_region
      %97 = dma.done [#allocation12], 512
    $region53: #{tpu_custom_call.1} parent=1 // pred_fallthru
      _
    %s99 = sld [smem:[#allocation4]]
    %v100 = vld [vmem:[#allocation5] sm:$0xf]
    %v101 = vld [vmem:[#allocation8] sm:$0xf]
    %v102 = vld [vmem:[#allocation8 + $0x4] sm:$0xf]
    %v103 = vld [vmem:[#allocation8 + $0x8] sm:$0xf]
    %v104 = vld [vmem:[#allocation8 + $0xc] sm:$0xf]
    %v105 = vld [vmem:[#allocation8 + $0x10] sm:$0xf]
    %v106 = vld [vmem:[#allocation8 + $0x14] sm:$0xf]
    %v107 = vld [vmem:[#allocation8 + $0x18] sm:$0xf]
    %v108 = vld [vmem:[#allocation8 + $0x1c] sm:$0xf]
    %v109 = vld [vmem:[#allocation8 + $0x20] sm:$0xf]
    %v110 = vld [vmem:[#allocation8 + $0x24] sm:$0xf]
    %v111 = vld [vmem:[#allocation8 + $0x28] sm:$0xf]
    %v112 = vld [vmem:[#allocation8 + $0x2c] sm:$0xf]
    %v113 = vld [vmem:[#allocation8 + $0x30] sm:$0xf]
    %v114 = vld [vmem:[#allocation8 + $0x34] sm:$0xf]
    %v115 = vld [vmem:[#allocation8 + $0x38] sm:$0xf]
    %v116 = vld [vmem:[#allocation8 + $0x3c] sm:$0xf]
    %v117 = vld [vmem:[%s3] sm:$0x1]
    %v119 = vlaneseq
    %v120 = vshrl.u32 %v119, 7
    %v121 = vsub.s32 0, %v120
    %v122 = vrot.slane %v117, %v121
    %v140 = vunpack.c.l.b16 %v101
    %v141 = vunpack.c.l.b16 %v102
    %v142 = vunpack.c.l.b16 %v103
    %v143 = vunpack.c.l.b16 %v104
    %v144 = vunpack.c.l.b16 %v105
    %v145 = vunpack.c.l.b16 %v106
    %v146 = vunpack.c.l.b16 %v107
    %v147 = vunpack.c.l.b16 %v108
    %v148 = vunpack.c.l.b16 %v109
    %v149 = vunpack.c.l.b16 %v110
    %v150 = vunpack.c.l.b16 %v111
    %v151 = vunpack.c.l.b16 %v112
    %v152 = vunpack.c.l.b16 %v113
    %v153 = vunpack.c.l.b16 %v114
    %v154 = vunpack.c.l.b16 %v115
    %v155 = vunpack.c.l.b16 %v116
    %v156 = vpack.c.b16 %v141, %v140
    %v157 = vpack.c.b16 %v143, %v142
    %v158 = vpack.c.b16 %v145, %v144
    %v159 = vpack.c.b16 %v147, %v146
    %v160 = vpack.c.b16 %v149, %v148
    %v161 = vpack.c.b16 %v151, %v150
    %v162 = vpack.c.b16 %v153, %v152
    %v163 = vpack.c.b16 %v155, %v154
    %172 = vmatprep.subr.bf16.mxu0 0
    %173 = vmatpush1.bf16.msra.mxu0 %v163
    %174 = vmatprep.subr.bf16.mxu0 0
    %175 = vmatpush1.bf16.msra.mxu0 %v162
    %176 = vmatprep.subr.bf16.mxu0 0
    %177 = vmatpush1.bf16.msra.mxu0 %v161
    %178 = vmatprep.subr.bf16.mxu0 0
    %179 = vmatpush1.bf16.msra.mxu0 %v160
    %180 = vmatprep.subr.bf16.mxu0 0
    %181 = vmatpush1.bf16.msra.mxu0 %v159
    %182 = vmatprep.subr.bf16.mxu0 0
    %183 = vmatpush1.bf16.msra.mxu0 %v158
    %184 = vmatprep.subr.bf16.mxu0 0
    %185 = vmatpush1.bf16.msra.mxu0 %v157
    %186 = vmatprep.subr.bf16.mxu0 0
    %187 = vmatpush1.bf16.msra.mxu0 %v156
    %188 = vmatprep.subr.bf16.mxu0 0
    %189 = vmatpush2.bf16.msra.mxu0 0
    %190 = vmatprep.subr.bf16.mxu0 0
    %191 = vmatpush2.bf16.msra.mxu0 0
    %192 = vmatprep.subr.bf16.mxu0 0
    %193 = vmatpush2.bf16.msra.mxu0 0
    %194 = vmatprep.subr.bf16.mxu0 0
    %195 = vmatpush2.bf16.msra.mxu0 0
    %196 = vmatprep.subr.bf16.mxu0 0
    %197 = vmatpush2.bf16.msra.mxu0 0
    %198 = vmatprep.subr.bf16.mxu0 0
    %199 = vmatpush2.bf16.msra.mxu0 0
    %200 = vmatprep.subr.bf16.mxu0 0
    %201 = vmatpush2.bf16.msra.mxu0 0
    %202 = vmatprep.subr.bf16.mxu0 0
    %203 = vmatpush2.bf16.msra.mxu0 0
    %204 = vmatprep.mubr.bf16.mxu0 0
    %205 = vmatmul.mubr.bf16.gmra.mxu0 %v100
    %v206 = vpop.f32.mrf.mxu0
    %v207 = vadd.f32 %v122, %v206
    %v208 = vpop.f32.mrf.mxu0
    %v209 = vpop.f32.mrf.mxu0
    %v210 = vpop.f32.mrf.mxu0
    %211 = vdwg.mxu0
    %v212 = vmax.f32 %v207, 0.0
    %v213 = vld [vmem:[#allocation13] sm:$0xf]
    %v214 = vld [vmem:[#allocation13 + $0x4] sm:$0xf]
    %v215 = vunpack.c.l.bf16 %v213
    %v216 = vunpack.c.l.bf16 %v214
    %v217 = vmul.f32 %v212, %v215
    %v218 = vmul.f32 %v212, %v216
    %219 = vst [vmem:[#allocation2] sm:$0xff] %v217
    %220 = vst [vmem:[#allocation2 + $0x8] sm:$0xff] %v218
    %s221 = ssub.s32 %s99, 1
    %p222 = scmp.gt.s32.totalorder %s221, 0
    %s223 = scalar_select %p222, %s221, 0
    %p224 = scmp.lt.s32.totalorder %s223, 3
    %s225 = scalar_select %p224, %s223, 3
    // While loop
    $region54: #{tpu_custom_call.1} parent=1 // loop_pre_header
      _
    $region55: #{tpu_custom_call.1} parent=1 // loop_header
      %s227 = sphi 0, %s229
      %p228 = scmp.ge.s32.totalorder %s227, %s225
    $region56: #{tpu_custom_call.1} parent=1 // loop_header_branch
      %231 = sbr.rel (%p228) target = $region60
    $region57: #{tpu_custom_call.1} parent=1 // loop_body
      %v232 = vld [vmem:[#allocation2] sm:$0xff]
      %v233 = vld [vmem:[#allocation2 + $0x8] sm:$0xff]
      %s234 = smul.u32 %s227, 16
      %s235 = smul.addr %s234, 4
      %s236 = scalar_lea.vmem [#allocation10], %s235
      %v237 = vld [vmem:[%s236] sm:$0xf]
      %v238 = vld [vmem:[%s236 + $0x4] sm:$0xf]
      %v239 = vld [vmem:[%s236 + $0x8] sm:$0xf]
      %v240 = vld [vmem:[%s236 + $0xc] sm:$0xf]
      %v241 = vld [vmem:[%s236 + $0x10] sm:$0xf]
      %v242 = vld [vmem:[%s236 + $0x14] sm:$0xf]
      %v243 = vld [vmem:[%s236 + $0x18] sm:$0xf]
      %v244 = vld [vmem:[%s236 + $0x1c] sm:$0xf]
      %v245 = vld [vmem:[%s236 + $0x20] sm:$0xf]
      %v246 = vld [vmem:[%s236 + $0x24] sm:$0xf]
      %v247 = vld [vmem:[%s236 + $0x28] sm:$0xf]
      %v248 = vld [vmem:[%s236 + $0x2c] sm:$0xf]
      %v249 = vld [vmem:[%s236 + $0x30] sm:$0xf]
      %v250 = vld [vmem:[%s236 + $0x34] sm:$0xf]
      %v251 = vld [vmem:[%s236 + $0x38] sm:$0xf]
      %v252 = vld [vmem:[%s236 + $0x3c] sm:$0xf]
      %s253 = scalar_lea.vmem %s5, %s227
      %v254 = vld [vmem:[%s253] sm:$0x1]
      %s255 = sadd.s32 %s227, 1
      %s256 = smul.u32 %s255, 2
      %s257 = smul.addr %s256, 4
      %s258 = scalar_lea.vmem [#allocation13], %s257
      %v259 = vld [vmem:[%s258] sm:$0xf]
      %v260 = vld [vmem:[%s258 + $0x4] sm:$0xf]
      %v261 = vunpack.c.l.bf16 %v259
      %v262 = vunpack.c.l.bf16 %v260
      %v263 = vpack.c.bf16 %v233, %v232
      %v265 = vlaneseq
      %v266 = vshrl.u32 %v265, 7
      %v267 = vsub.s32 0, %v266
      %v268 = vrot.slane %v254, %v267
      %v286 = vunpack.c.l.b16 %v237
      %v287 = vunpack.c.l.b16 %v238
      %v288 = vunpack.c.l.b16 %v239
      %v289 = vunpack.c.l.b16 %v240
      %v290 = vunpack.c.l.b16 %v241
      %v291 = vunpack.c.l.b16 %v242
      %v292 = vunpack.c.l.b16 %v243
      %v293 = vunpack.c.l.b16 %v244
      %v294 = vunpack.c.l.b16 %v245
      %v295 = vunpack.c.l.b16 %v246
      %v296 = vunpack.c.l.b16 %v247
      %v297 = vunpack.c.l.b16 %v248
      %v298 = vunpack.c.l.b16 %v249
      %v299 = vunpack.c.l.b16 %v250
      %v300 = vunpack.c.l.b16 %v251
      %v301 = vunpack.c.l.b16 %v252
      %v302 = vpack.c.b16 %v287, %v286
      %v303 = vpack.c.b16 %v289, %v288
      %v304 = vpack.c.b16 %v291, %v290
      %v305 = vpack.c.b16 %v293, %v292
      %v306 = vpack.c.b16 %v295, %v294
      %v307 = vpack.c.b16 %v297, %v296
      %v308 = vpack.c.b16 %v299, %v298
      %v309 = vpack.c.b16 %v301, %v300
      %318 = vmatprep.subr.bf16.mxu0 0
      %319 = vmatpush1.bf16.msra.mxu0 %v309
      %320 = vmatprep.subr.bf16.mxu0 0
      %321 = vmatpush1.bf16.msra.mxu0 %v308
      %322 = vmatprep.subr.bf16.mxu0 0
      %323 = vmatpush1.bf16.msra.mxu0 %v307
      %324 = vmatprep.subr.bf16.mxu0 0
      %325 = vmatpush1.bf16.msra.mxu0 %v306
      %326 = vmatprep.subr.bf16.mxu0 0
      %327 = vmatpush1.bf16.msra.mxu0 %v305
      %328 = vmatprep.subr.bf16.mxu0 0
      %329 = vmatpush1.bf16.msra.mxu0 %v304
      %330 = vmatprep.subr.bf16.mxu0 0
      %331 = vmatpush1.bf16.msra.mxu0 %v303
      %332 = vmatprep.subr.bf16.mxu0 0
      %333 = vmatpush1.bf16.msra.mxu0 %v302
      %334 = vmatprep.subr.bf16.mxu0 0
      %335 = vmatpush2.bf16.msra.mxu0 0
      %336 = vmatprep.subr.bf16.mxu0 0
      %337 = vmatpush2.bf16.msra.mxu0 0
      %338 = vmatprep.subr.bf16.mxu0 0
      %339 = vmatpush2.bf16.msra.mxu0 0
      %340 = vmatprep.subr.bf16.mxu0 0
      %341 = vmatpush2.bf16.msra.mxu0 0
      %342 = vmatprep.subr.bf16.mxu0 0
      %343 = vmatpush2.bf16.msra.mxu0 0
      %344 = vmatprep.subr.bf16.mxu0 0
      %345 = vmatpush2.bf16.msra.mxu0 0
      %346 = vmatprep.subr.bf16.mxu0 0
      %347 = vmatpush2.bf16.msra.mxu0 0
      %348 = vmatprep.subr.bf16.mxu0 0
      %349 = vmatpush2.bf16.msra.mxu0 0
      %350 = vmatprep.mubr.bf16.mxu0 0
      %351 = vmatmul.mubr.bf16.gmra.mxu0 %v263
      %v352 = vpop.f32.mrf.mxu0
      %v353 = vadd.f32 %v268, %v352
      %v354 = vpop.f32.mrf.mxu0
      %v355 = vpop.f32.mrf.mxu0
      %v356 = vadd.f32 %v268, %v355
      %v357 = vpop.f32.mrf.mxu0
      %358 = vdwg.mxu0
      %v359 = vmax.f32 %v353, 0.0
      %v360 = vmax.f32 %v356, 0.0
      %v361 = vmul.f32 %v359, %v261
      %v362 = vmul.f32 %v360, %v262
      %v363 = vadd.f32 %v361, %v232
      %v364 = vadd.f32 %v362, %v233
      %365 = vst [vmem:[#allocation2] sm:$0xff] %v363
      %366 = vst [vmem:[#allocation2 + $0x8] sm:$0xff] %v364
    $region58: #{tpu_custom_call.1} parent=1 // loop_footer
      %s229 = sadd.s32 %s227, 1
    $region59: #{tpu_custom_call.1} parent=1 // loop_footer_branch
      %226 = sbr.rel target = $region55
    $region60: #{tpu_custom_call.1} parent=1 // loop_exit
      _
    %v367 = vld [vmem:[#allocation2] sm:$0xff]
    %v368 = vld [vmem:[#allocation2 + $0x8] sm:$0xff]
    %v369 = vpack.c.bf16 %v368, %v367
    %v370 = vld [vmem:[#allocation11] sm:$0xf]
    %v371 = vld [vmem:[#allocation11 + $0x4] sm:$0xf]
    %v372 = vld [vmem:[#allocation11 + $0x8] sm:$0xf]
    %v373 = vld [vmem:[#allocation11 + $0xc] sm:$0xf]
    %v374 = vld [vmem:[#allocation11 + $0x10] sm:$0xf]
    %v375 = vld [vmem:[#allocation11 + $0x14] sm:$0xf]
    %v376 = vld [vmem:[#allocation11 + $0x18] sm:$0xf]
    %v377 = vld [vmem:[#allocation11 + $0x1c] sm:$0xf]
    %v378 = vld [vmem:[#allocation11 + $0x20] sm:$0xf]
    %v379 = vld [vmem:[#allocation11 + $0x24] sm:$0xf]
    %v380 = vld [vmem:[#allocation11 + $0x28] sm:$0xf]
    %v381 = vld [vmem:[#allocation11 + $0x2c] sm:$0xf]
    %v382 = vld [vmem:[#allocation11 + $0x30] sm:$0xf]
    %v383 = vld [vmem:[#allocation11 + $0x34] sm:$0xf]
    %v384 = vld [vmem:[#allocation11 + $0x38] sm:$0xf]
    %v385 = vld [vmem:[#allocation11 + $0x3c] sm:$0xf]
    %v386 = vld [vmem:[%s7] sm:$0x1]
    %v388 = vlaneseq
    %v389 = vshrl.u32 %v388, 7
    %v390 = vsub.s32 0, %v389
    %v391 = vrot.slane %v386, %v390
    %v409 = vunpack.c.l.b16 %v370
    %v410 = vunpack.c.l.b16 %v371
    %v411 = vunpack.c.l.b16 %v372
    %v412 = vunpack.c.l.b16 %v373
    %v413 = vunpack.c.l.b16 %v374
    %v414 = vunpack.c.l.b16 %v375
    %v415 = vunpack.c.l.b16 %v376
    %v416 = vunpack.c.l.b16 %v377
    %v417 = vunpack.c.l.b16 %v378
    %v418 = vunpack.c.l.b16 %v379
    %v419 = vunpack.c.l.b16 %v380
    %v420 = vunpack.c.l.b16 %v381
    %v421 = vunpack.c.l.b16 %v382
    %v422 = vunpack.c.l.b16 %v383
    %v423 = vunpack.c.l.b16 %v384
    %v424 = vunpack.c.l.b16 %v385
    %v425 = vpack.c.b16 %v410, %v409
    %v426 = vpack.c.b16 %v412, %v411
    %v427 = vpack.c.b16 %v414, %v413
    %v428 = vpack.c.b16 %v416, %v415
    %v429 = vpack.c.b16 %v418, %v417
    %v430 = vpack.c.b16 %v420, %v419
    %v431 = vpack.c.b16 %v422, %v421
    %v432 = vpack.c.b16 %v424, %v423
    %441 = vmatprep.subr.bf16.mxu0 0
    %442 = vmatpush1.bf16.msra.mxu0 %v432
    %443 = vmatprep.subr.bf16.mxu0 0
    %444 = vmatpush1.bf16.msra.mxu0 %v431
    %445 = vmatprep.subr.bf16.mxu0 0
    %446 = vmatpush1.bf16.msra.mxu0 %v430
    %447 = vmatprep.subr.bf16.mxu0 0
    %448 = vmatpush1.bf16.msra.mxu0 %v429
    %449 = vmatprep.subr.bf16.mxu0 0
    %450 = vmatpush1.bf16.msra.mxu0 %v428
    %451 = vmatprep.subr.bf16.mxu0 0
    %452 = vmatpush1.bf16.msra.mxu0 %v427
    %453 = vmatprep.subr.bf16.mxu0 0
    %454 = vmatpush1.bf16.msra.mxu0 %v426
    %455 = vmatprep.subr.bf16.mxu0 0
    %456 = vmatpush1.bf16.msra.mxu0 %v425
    %457 = vmatprep.subr.bf16.mxu0 0
    %458 = vmatpush2.bf16.msra.mxu0 0
    %459 = vmatprep.subr.bf16.mxu0 0
    %460 = vmatpush2.bf16.msra.mxu0 0
    %461 = vmatprep.subr.bf16.mxu0 0
    %462 = vmatpush2.bf16.msra.mxu0 0
    %463 = vmatprep.subr.bf16.mxu0 0
    %464 = vmatpush2.bf16.msra.mxu0 0
    %465 = vmatprep.subr.bf16.mxu0 0
    %466 = vmatpush2.bf16.msra.mxu0 0
    %467 = vmatprep.subr.bf16.mxu0 0
    %468 = vmatpush2.bf16.msra.mxu0 0
    %469 = vmatprep.subr.bf16.mxu0 0
    %470 = vmatpush2.bf16.msra.mxu0 0
    %471 = vmatprep.subr.bf16.mxu0 0
    %472 = vmatpush2.bf16.msra.mxu0 0
    %473 = vmatprep.mubr.bf16.mxu0 0
    %474 = vmatmul.mubr.bf16.gmra.mxu0 %v369
    %v475 = vpop.f32.mrf.mxu0
    %v476 = vadd.f32 %v391, %v475
    %v477 = vpop.f32.mrf.mxu0
    %v478 = vpop.f32.mrf.mxu0
    %v479 = vadd.f32 %v391, %v478
    %v480 = vpop.f32.mrf.mxu0
    %481 = vdwg.mxu0
    %482 = vst [vmem:[#allocation14] sm:$0xff] %v476
    %483 = vst [vmem:[#allocation14 + $0x8] sm:$0xff] %v479
    // Predicated region
    $region61: #{tpu_custom_call.1} parent=1 // pred_check
      _
    $region62: #{tpu_custom_call.1} parent=1 // pred_check_branch
      %485 = sbr.rel (0) target = $region64
    $region63: #{tpu_custom_call.1} parent=1 // pred_region
      %s487 = ssub.s32 256, 256
      %488 = vsyncadd [#allocation7], %s487
      %s489 = sshll.u32 [#allocation14], 4
      %s490 = int_to_ptr.vmem [resolvable:$true] %s489
      %495 = dma.vmem_to_hbm [thread:$0]  %s490, 256, %s9, [#allocation7], 128, 128, 8
    $region64: #{tpu_custom_call.1} parent=1 // pred_fallthru
      _
    // Predicated region
    $region65: #{tpu_custom_call.1} parent=1 // pred_check
      _
    $region66: #{tpu_custom_call.1} parent=1 // pred_check_branch
      %497 = sbr.rel (0) target = $region68
    $region67: #{tpu_custom_call.1} parent=1 // pred_region
      %498 = dma.done [#allocation7], 256
    $region68: #{tpu_custom_call.1} parent=1 // pred_fallthru
      _
    %499 = vsyncpa [#allocation6], 1
    %500 = vsyncpa [#allocation9], 1
    %501 = vsyncpa [#allocation12], 1
    %502 = vsyncpa [#allocation7], 1

</llo_original>
